<compile_context>
chip_gen: v7x
topology: tpu7x:2x2x1
jax: 0.10.0
libtpu: 0.0.40
codegen_flags: <defaults>
</compile_context>

<pallas_src>
import functools

import jax
import jax.numpy as jnp
import numpy as np
from jax.experimental import pallas as pl
from jax.experimental.pallas import tpu as pltpu


def make_cnn_kernel(TN, T, OC):
    """One grid block = TN samples; patches are time-major: patches_ref[t] -> (TN, K)."""
    OC2 = 2 * OC

    def kernel(patches_ref, w_ref, bias_ref, wfc_ref, bfc_ref, out_ref, acc_ref):
        # Running temporal max lives in a (TN, OC) f32 VMEM scratch (re-init every block,
        # so the batch grid axis stays safely "parallel").
        acc_ref[...] = jnp.full((TN, OC), -jnp.inf, dtype=jnp.float32)
        w = w_ref[...]                                               # (K, 2*OC), loop-invariant

        def step(t, carry):
            # One time step for all TN samples: (TN, K) x (K, 2*OC) on the MXU.
            p = patches_ref[t]                                       # (TN, K), BN scale pre-folded
            conv = jnp.dot(p, w, preferred_element_type=jnp.float32)
            conv = conv + bias_ref[t]                                # conv bias + folded BN shift
            # GLU along the channel dim: first half gated by sigmoid of second half.
            glu = conv[:, :OC] * jax.nn.sigmoid(conv[:, OC:])        # (TN, OC)
            acc_ref[...] = jnp.maximum(acc_ref[...], glu)            # temporal max
            return carry

        jax.lax.fori_loop(0, T, step, 0)

        # fc (OC -> 1), packed lane-dense: (1, OC) . (TN, OC)^T -> (1, TN) output row.
        vals = acc_ref[...]                                          # (TN, OC)
        logits = jax.lax.dot_general(
            wfc_ref[...], vals,
            dimension_numbers=(((1,), (1,)), ((), ())),
            preferred_element_type=jnp.float32) + bfc_ref[...]       # (1, TN)
        out_ref[...] = logits.reshape(1, 1, TN)

    return kernel


@functools.partial(jax.jit, static_argnames=("kernel_size", "stride", "use_bf16"))
def cnn_forward(x, params, *, kernel_size=8, stride=2, use_bf16=False):
    (gamma, beta, run_mean, run_var, conv_w, conv_b, fc_w, fc_b) = params
    N, F = x.shape
    OC2, C, K = conv_w.shape
    OC = OC2 // 2
    if K != kernel_size:
        raise ValueError(f"kernel_size={kernel_size} does not match conv weight K={K}")
    eps = 1e-5
    T = (F - K) // stride + 1                                        # 34

    # ---- parameter-side prep (params only; folded into the jit, done once) ----
    scale_vec = gamma / jnp.sqrt(run_var + eps)                      # (F,)
    shift_vec = beta - run_mean * scale_vec                          # (F,)
    idx = (np.arange(T) * stride)[:, None] + np.arange(K)[None, :]   # (T, K), static
    scale_patch = scale_vec[idx]                                     # (T, K)
    shift_patch = shift_vec[idx]                                     # (T, K)
    # Channel collapse: all C conv input channels carry the same signal -> sum the weight.
    w_eff = jnp.transpose(jnp.sum(conv_w, axis=1), (1, 0))           # (K, 2*OC), f32
    # Fold the BN shift into a per-time-step conv bias (pure parameter algebra).
    bias_t = (shift_patch @ w_eff + conv_b[None, :]).reshape(T, 1, OC2)   # (T, 1, 2*OC)
    wfc = fc_w.reshape(1, OC)
    bfc = fc_b.reshape(1, 1)

    # ---- batch tiling: big tiles to amortize per-grid-step overhead, TN % 8 == 0 ----
    def round_up(a, b):
        return -(-a // b) * b

    TN = min(128, round_up(N, 8))
    n_blocks = -(-N // TN)
    N_pad = n_blocks * TN

    # ---- x-dependent glue (jit-fused): pad, static window gather, fold BN scale,
    #      reorder time-major within each batch block ----
    x_p = x if N_pad == N else jnp.pad(x, ((0, N_pad - N), (0, 0)))
    mm_dtype = jnp.bfloat16 if use_bf16 else jnp.float32
    patches = x_p[:, idx] * scale_patch[None, :, :]                  # (N_pad, T, K), f32
    patches = patches.reshape(n_blocks, TN, T, K).transpose(0, 2, 1, 3)
    patches = patches.reshape(n_blocks * T, TN, K).astype(mm_dtype)  # block i rows [i*T,(i+1)*T)

    out = pl.pallas_call(
        make_cnn_kernel(TN, T, OC),
        out_shape=jax.ShapeDtypeStruct((n_blocks, 1, TN), jnp.float32),
        grid=(n_blocks,),
        in_specs=[
            pl.BlockSpec((T, TN, K), lambda i: (i, 0, 0)),   # time-major, BN-scaled patches
            pl.BlockSpec((K, OC2), lambda i: (0, 0)),        # channel-collapsed conv weight
            pl.BlockSpec((T, 1, OC2), lambda i: (0, 0, 0)),  # per-t bias (conv_b + BN shift)
            pl.BlockSpec((1, OC), lambda i: (0, 0)),         # fc weight
            pl.BlockSpec((1, 1), lambda i: (0, 0)),          # fc bias
        ],
        out_specs=pl.BlockSpec((1, 1, TN), lambda i: (i, 0, 0)),     # lane-dense logit row
        scratch_shapes=[pltpu.VMEM((TN, OC), jnp.float32)],          # temporal-max accumulator
        compiler_params=pltpu.CompilerParams(dimension_semantics=("parallel",)),
    )(
        patches,
        w_eff.astype(mm_dtype),
        bias_t.astype(jnp.float32),
        wfc.astype(jnp.float32),
        bfc.astype(jnp.float32),
    )
    return out.reshape(N_pad)[:N]                                    # (N,)


def cnn_reference(x, params, *, kernel_size=8, stride=2):
    """Pure-JAX reference mirroring the PyTorch forward (eval mode)."""
    (gamma, beta, run_mean, run_var, conv_w, conv_b, fc_w, fc_b) = params
    N, F = x.shape
    OC2, C, K = conv_w.shape
    OC = OC2 // 2
    eps = 1e-5
    bn = gamma * (x - run_mean) / jnp.sqrt(run_var + eps) + beta
    conv_in = jnp.broadcast_to(bn[:, None, :], (N, C, F))            # NCL (8 identical channels)
    conv_out = jax.lax.conv_general_dilated(
        conv_in, conv_w, window_strides=(stride,), padding="VALID",
        dimension_numbers=("NCH", "OIH", "NCH"),
    ) + conv_b[None, :, None]                                        # (N, 2*OC, T)
    a, g = conv_out[:, :OC, :], conv_out[:, OC:, :]
    glu = a * jax.nn.sigmoid(g)
    vals = jnp.max(glu, axis=-1)                                     # (N, OC)
    return (vals @ fc_w.T + fc_b)[:, 0]


if __name__ == "__main__":
    feature_dim, embed_dim, out_channels, ksize, stride = 75, 8, 128, 8, 2

    key = jax.random.PRNGKey(0)
    ks = jax.random.split(key, 10)
    gamma    = jax.random.uniform(ks[0], (feature_dim,), minval=0.5, maxval=1.5)
    beta     = 0.1 * jax.random.normal(ks[1], (feature_dim,))
    run_mean = 0.1 * jax.random.normal(ks[2], (feature_dim,))
    run_var  = jax.random.uniform(ks[3], (feature_dim,), minval=0.5, maxval=1.5)
    conv_w   = 0.05 * jax.random.normal(ks[4], (out_channels * 2, embed_dim, ksize))
    conv_b   = 0.05 * jax.random.normal(ks[5], (out_channels * 2,))
    fc_w     = 0.05 * jax.random.normal(ks[6], (1, out_channels))
    fc_b     = 0.05 * jax.random.normal(ks[7], (1,))
    params = (gamma, beta, run_mean, run_var, conv_w, conv_b, fc_w, fc_b)

    # Small batch: single block (TN=8 after padding), strict f32 tolerance.
    x_small = jax.random.normal(ks[8], (4, feature_dim), dtype=jnp.float32)
    ref_small = jax.block_until_ready(
        cnn_reference(x_small, params, kernel_size=ksize, stride=stride))
    out_small = jax.block_until_ready(
        cnn_forward(x_small, params, kernel_size=ksize, stride=stride))
    assert out_small.shape == (4,)
    np.testing.assert_allclose(np.asarray(out_small), np.asarray(ref_small),
                               rtol=1e-3, atol=1e-3)

    # Larger batch: exercises TN=128 tiles, batch padding, multi-block parallel grid.
    x_big = jax.random.normal(ks[9], (300, feature_dim), dtype=jnp.float32)
    ref_big = jax.block_until_ready(
        cnn_reference(x_big, params, kernel_size=ksize, stride=stride))
    out_big = jax.block_until_ready(
        cnn_forward(x_big, params, kernel_size=ksize, stride=stride))
    assert out_big.shape == (300,)
    np.testing.assert_allclose(np.asarray(out_big), np.asarray(ref_big),
                               rtol=1e-3, atol=1e-3)

    # Optional bf16 patch/weight path (bandwidth saving only), bf16-appropriate tolerance.
    out_bf16 = jax.block_until_ready(
        cnn_forward(x_small, params, kernel_size=ksize, stride=stride, use_bf16=True))
    np.testing.assert_allclose(np.asarray(out_bf16), np.asarray(ref_small),
                               rtol=2e-2, atol=1e-2)

    print("KERNEL_OK")
</pallas_src>

<mosaic_0001>
module attributes {stable_mosaic.version = 11 : i64} {
  func.func @kernel(%arg0: i32, %arg1: memref<34x8x8xf32, #tpu.memory_space<vmem>>, %arg2: memref<8x256xf32, #tpu.memory_space<vmem>>, %arg3: memref<34x1x256xf32, #tpu.memory_space<vmem>>, %arg4: memref<1x128xf32, #tpu.memory_space<vmem>>, %arg5: memref<1x1xf32, #tpu.memory_space<vmem>>, %arg6: memref<1x1x8xf32, #tpu.memory_space<vmem>>, %arg7: memref<8x128xf32, #tpu.memory_space<vmem>>) attributes {dimension_semantics = [#tpu.dimension_semantics<parallel>], iteration_bounds = array<i64: 1>, scalar_prefetch = 0 : i64, scratch_operands = 1 : i64, tpu.core_type = #tpu.core_type<tc>, window_params = [{transform_indices = @transform_0, window_bounds = array<i64: 34, 8, 8>}, {pipeline_mode = #tpu.pipeline_mode<synchronous>, transform_indices = @transform_1, window_bounds = array<i64: 8, 256>}, {pipeline_mode = #tpu.pipeline_mode<synchronous>, transform_indices = @transform_2, window_bounds = array<i64: 34, 1, 256>}, {pipeline_mode = #tpu.pipeline_mode<synchronous>, transform_indices = @transform_3, window_bounds = array<i64: 1, 128>}, {pipeline_mode = #tpu.pipeline_mode<synchronous>, transform_indices = @transform_4, window_bounds = array<i64: 1, 1>}, {transform_indices = @transform_5, window_bounds = array<i64: 1, 1, 8>}]} {
    %cst = arith.constant 0xFF800000 : f32
    %0 = vector.broadcast %cst : f32 to vector<8x128xf32>
    %c0 = arith.constant 0 : index
    %c0_0 = arith.constant 0 : index
    %1 = vector.load %arg7[%c0, %c0_0] : memref<8x128xf32, #tpu.memory_space<vmem>>, vector<8x128xf32>
    tpu.vector_store %arg7[%c0, %c0_0], %0 {strides = array<i32>} : memref<8x128xf32, #tpu.memory_space<vmem>>, vector<8x128xf32>,
    %c0_1 = arith.constant 0 : index
    %c0_2 = arith.constant 0 : index
    %2 = vector.load %arg2[%c0_1, %c0_2] : memref<8x256xf32, #tpu.memory_space<vmem>>, vector<8x256xf32>
    %c0_i32 = arith.constant 0 : i32
    %c34_i32 = arith.constant 34 : i32
    %3 = arith.addi %c0_i32, %c34_i32 : i32
    %c1_i32 = arith.constant 1 : i32
    scf.for %arg8 = %c0_i32 to %3 step %c1_i32  : i32 {
      %12 = arith.index_cast %arg8 : i32 to index
      %c0_14 = arith.constant 0 : index
      %c0_15 = arith.constant 0 : index
      %13 = vector.load %arg1[%12, %c0_14, %c0_15] : memref<34x8x8xf32, #tpu.memory_space<vmem>>, vector<1x8x8xf32>
      %14 = vector.shape_cast %13 : vector<1x8x8xf32> to vector<8x8xf32>
      %cst_16 = arith.constant dense<0.000000e+00> : vector<8x256xf32>
      %15 = tpu.matmul %14, %2, %cst_16 {dimension_numbers = #tpu.dot_dimension_numbers<[1], [0], [0], [1], [0, 0, 1, 1], [], []>} : vector<8x8xf32>, vector<8x256xf32>, vector<8x256xf32> -> vector<8x256xf32>
      %16 = arith.index_cast %arg8 : i32 to index
      %c0_17 = arith.constant 0 : index
      %c0_18 = arith.constant 0 : index
      %17 = vector.load %arg3[%16, %c0_17, %c0_18] : memref<34x1x256xf32, #tpu.memory_space<vmem>>, vector<1x1x256xf32>
      %18 = vector.shape_cast %17 : vector<1x1x256xf32> to vector<1x256xf32>
      %19 = vector.broadcast %18 : vector<1x256xf32> to vector<8x256xf32>
      %20 = arith.addf %15, %19 : vector<8x256xf32>
      %21 = vector.extract_strided_slice %20 {offsets = [0, 0], sizes = [8, 128], strides = [1, 1]} : vector<8x256xf32> to vector<8x128xf32>
      %22 = vector.extract_strided_slice %20 {offsets = [0, 128], sizes = [8, 128], strides = [1, 1]} : vector<8x256xf32> to vector<8x128xf32>
      %23 = arith.negf %22 : vector<8x128xf32>
      %24 = math.exp %23 : vector<8x128xf32>
      %cst_19 = arith.constant 1.000000e+00 : f32
      %25 = vector.broadcast %cst_19 : f32 to vector<8x128xf32>
      %26 = arith.addf %25, %24 : vector<8x128xf32>
      %27 = arith.divf %25, %26 : vector<8x128xf32>
      %28 = arith.mulf %21, %27 : vector<8x128xf32>
      %c0_20 = arith.constant 0 : index
      %c0_21 = arith.constant 0 : index
      %29 = vector.load %arg7[%c0_20, %c0_21] : memref<8x128xf32, #tpu.memory_space<vmem>>, vector<8x128xf32>
      %30 = arith.maximumf %29, %28 : vector<8x128xf32>
      %c0_22 = arith.constant 0 : index
      %c0_23 = arith.constant 0 : index
      %31 = vector.load %arg7[%c0_22, %c0_23] : memref<8x128xf32, #tpu.memory_space<vmem>>, vector<8x128xf32>
      tpu.vector_store %arg7[%c0_22, %c0_23], %30 {strides = array<i32>} : memref<8x128xf32, #tpu.memory_space<vmem>>, vector<8x128xf32>,
    }
    %c34_i32_3 = arith.constant 34 : i32
    %c0_4 = arith.constant 0 : index
    %c0_5 = arith.constant 0 : index
    %4 = vector.load %arg7[%c0_4, %c0_5] : memref<8x128xf32, #tpu.memory_space<vmem>>, vector<8x128xf32>
    %c0_6 = arith.constant 0 : index
    %c0_7 = arith.constant 0 : index
    %5 = vector.load %arg4[%c0_6, %c0_7] : memref<1x128xf32, #tpu.memory_space<vmem>>, vector<1x128xf32>
    %cst_8 = arith.constant dense<0.000000e+00> : vector<1x8xf32>
    %6 = tpu.matmul %5, %4, %cst_8 {dimension_numbers = #tpu.dot_dimension_numbers<[1], [1], [0], [0], [0, 0, 1, 0], [], []>} : vector<1x128xf32>, vector<8x128xf32>, vector<1x8xf32> -> vector<1x8xf32>
    %c0_9 = arith.constant 0 : index
    %c0_10 = arith.constant 0 : index
    %7 = vector.load %arg5[%c0_9, %c0_10] : memref<1x1xf32, #tpu.memory_space<vmem>>, vector<1x1xf32>
    %8 = vector.broadcast %7 : vector<1x1xf32> to vector<1x8xf32>
    %9 = arith.addf %6, %8 : vector<1x8xf32>
    %10 = vector.shape_cast %9 : vector<1x8xf32> to vector<1x1x8xf32>
    %c0_11 = arith.constant 0 : index
    %c0_12 = arith.constant 0 : index
    %c0_13 = arith.constant 0 : index
    %11 = vector.load %arg6[%c0_11, %c0_12, %c0_13] : memref<1x1x8xf32, #tpu.memory_space<vmem>>, vector<1x1x8xf32>
    tpu.vector_store %arg6[%c0_11, %c0_12, %c0_13], %10 {strides = array<i32>} : memref<1x1x8xf32, #tpu.memory_space<vmem>>, vector<1x1x8xf32>,
    return
  }
  func.func @transform_0(%arg0: i32) -> (i32, i32, i32) {
    %c0_i32 = arith.constant 0 : i32
    %c0_i32_0 = arith.constant 0 : i32
    %c0_i32_1 = arith.constant 0 : i32
    return %arg0, %c0_i32, %c0_i32_0 : i32, i32, i32
  }
  func.func @transform_1(%arg0: i32) -> (i32, i32) {
    %c0_i32 = arith.constant 0 : i32
    %c0_i32_0 = arith.constant 0 : i32
    %c0_i32_1 = arith.constant 0 : i32
    return %c0_i32, %c0_i32_0 : i32, i32
  }
  func.func @transform_2(%arg0: i32) -> (i32, i32, i32) {
    %c0_i32 = arith.constant 0 : i32
    %c0_i32_0 = arith.constant 0 : i32
    %c0_i32_1 = arith.constant 0 : i32
    %c0_i32_2 = arith.constant 0 : i32
    return %c0_i32, %c0_i32_0, %c0_i32_1 : i32, i32, i32
  }
  func.func @transform_3(%arg0: i32) -> (i32, i32) {
    %c0_i32 = arith.constant 0 : i32
    %c0_i32_0 = arith.constant 0 : i32
    %c0_i32_1 = arith.constant 0 : i32
    return %c0_i32, %c0_i32_0 : i32, i32
  }
  func.func @transform_4(%arg0: i32) -> (i32, i32) {
    %c0_i32 = arith.constant 0 : i32
    %c0_i32_0 = arith.constant 0 : i32
    %c0_i32_1 = arith.constant 0 : i32
    return %c0_i32, %c0_i32_0 : i32, i32
  }
  func.func @transform_5(%arg0: i32) -> (i32, i32, i32) {
    %c0_i32 = arith.constant 0 : i32
    %c0_i32_0 = arith.constant 0 : i32
    %c0_i32_1 = arith.constant 0 : i32
    return %arg0, %c0_i32, %c0_i32_0 : i32, i32, i32
  }
}

</mosaic_0001>

<llo_original>
// kernel: cnn_forward.1
$region0: #{cnn_forward.1}
  #allocation0 [shape = 'u32[]', space=smem, size = 0x4, offset = 0x4, fixed_abs, tag = 'smem constant byte address 0x4 - core index']
  #allocation1 [shape = 'u32[144,128]{1,0:T(1,128)}', space=vmem, size = 0x12000, scoped, tag = 'internal scratch']
  #allocation2 [shape = 'f32[8,128]{1,0:T(8,128)}', space=vmem, size = 0x1000, scoped, tag = 'scratch operand']
  #allocation3 [shape = 'f32[1,1]{1,0:T(1,128)S(1)}', space=vmem, size = 0x200, scoped, tag = 'scoped memory for cnn_forward.1']
  %s0 = inlined_call_operand.vmem [shape: f32[34,8,8], index: 0, kind: input, shape index: {}]
  %s1 = inlined_call_operand.vmem [shape: f32[8,256], index: 1, kind: input, shape index: {}]
  %s2 = inlined_call_operand.vmem [shape: f32[34,1,256], index: 2, kind: input, shape index: {}]
  %s3 = inlined_call_operand.vmem [shape: f32[1,128], index: 3, kind: input, shape index: {}]
  %s4 = inlined_call_operand.<no memory space> [shape: f32[1,1], index: 4, kind: input, shape index: {}]
  %s5 = inlined_call_operand.vmem [shape: f32[1,1,8], index: 5, kind: output, shape index: {}]
  %s6 = sld [smem:[#allocation0]]
  $region37: #{cnn_forward.1} parent=0
    _
  %s8 = ssub.s32 1, %s6
  %s9 = scalar_select 0, %s8, %s6
  %v10 = vstv %s4
  %11 = vst [vmem:[#allocation3] sm:$0x1] %v10
  // Predicated region
  $region2: #{cnn_forward.1} parent=0 // pred_check
    _
  $region3: #{cnn_forward.1} parent=0 // pred_check_branch
    %13 = sbr.rel (0) target = $region5
  $region4: #{cnn_forward.1} parent=0 // pred_region
    _
  $region5: #{cnn_forward.1} parent=0 // pred_fallthru
    _
  // Predicated region
  $region6: #{cnn_forward.1} parent=0 // pred_check
    _
  $region7: #{cnn_forward.1} parent=0 // pred_check_branch
    %15 = sbr.rel (0) target = $region9
  $region8: #{cnn_forward.1} parent=0 // pred_region
    _
  $region9: #{cnn_forward.1} parent=0 // pred_fallthru
    _
  // Predicated region
  $region10: #{cnn_forward.1} parent=0 // pred_check
    _
  $region11: #{cnn_forward.1} parent=0 // pred_check_branch
    %17 = sbr.rel (0) target = $region13
  $region12: #{cnn_forward.1} parent=0 // pred_region
    _
  $region13: #{cnn_forward.1} parent=0 // pred_fallthru
    _
  // Predicated region
  $region14: #{cnn_forward.1} parent=0 // pred_check
    _
  $region15: #{cnn_forward.1} parent=0 // pred_check_branch
    %19 = sbr.rel (0) target = $region17
  $region16: #{cnn_forward.1} parent=0 // pred_region
    _
  $region17: #{cnn_forward.1} parent=0 // pred_fallthru
    _
  // Predicated region
  $region18: #{cnn_forward.1} parent=0 // pred_check
    _
  $region19: #{cnn_forward.1} parent=0 // pred_check_branch
    %21 = sbr.rel (0) target = $region21
  $region20: #{cnn_forward.1} parent=0 // pred_region
    _
  $region21: #{cnn_forward.1} parent=0 // pred_fallthru
    _
  %22 = vst [vmem:[#allocation2] sm:$0xff] -inf
  %v23 = vld [vmem:[%s1] sm:$0xff]
  %v24 = vld [vmem:[%s1 + $0x8] sm:$0xff]
  loop: start=0, step=1, limit=34
  $region22: #{cnn_forward.1} parent=0 // loop_pre_header
    _
  $region23: #{cnn_forward.1} parent=0 // loop_header
    %s26 = sphi 0, %s30
    %p27 = scmp.ge.s32.totalorder %s26, 34
  $region24: #{cnn_forward.1} parent=0 // loop_header_branch
    %29 = sbr.rel (%p27) target = $region28
  $region25: #{cnn_forward.1} parent=0 // loop_body
    %s31 = smul.u32 %s26, 8
    %s32 = scalar_lea.vmem %s0, %s31
    %v33 = vld [vmem:[%s32] sm:$0xff]
    %s34 = smul.u32 %s26, 2
    %s35 = scalar_lea.vmem %s2, %s34
    %v36 = vld [vmem:[%s35] sm:$0x3]
    %v38 = vlaneseq
    %v39 = vshrl.u32 %v38, 7
    %v40 = vsub.s32 0, %v39
    %v41 = vrot.slane %v36, %v40
    %v42 = vlaneseq
    %v43 = vshrl.u32 %v42, 7
    %v44 = vsub.s32 1, %v43
    %v45 = vrot.slane %v36, %v44
    %vm48 = vcmask 64512
    %v50 = vsel %vm48, %v33, 0
    %52 = vmatprep.subr.mxu0 %v24
    %53 = vmatpush1.msra.mxu0 %v23
    %54 = vmatprep.subr.mxu0 0.0
    %55 = vmatpush1.msra.mxu0 0.0
    %56 = vmatprep.subr.mxu0 0.0
    %57 = vmatpush1.msra.mxu0 0.0
    %58 = vmatprep.subr.mxu0 0.0
    %59 = vmatpush1.msra.mxu0 0.0
    %60 = vmatprep.subr.mxu0 0.0
    %61 = vmatpush1.msra.mxu0 0.0
    %62 = vmatprep.subr.mxu0 0.0
    %63 = vmatpush1.msra.mxu0 0.0
    %64 = vmatprep.subr.mxu0 0.0
    %65 = vmatpush1.msra.mxu0 0.0
    %66 = vmatprep.subr.mxu0 0.0
    %67 = vmatpush1.msra.mxu0 0.0
    %68 = vmatprep.subr.mxu0 0.0
    %69 = vmatpush1.msra.mxu0 0.0
    %70 = vmatprep.subr.mxu0 0.0
    %71 = vmatpush1.msra.mxu0 0.0
    %72 = vmatprep.subr.mxu0 0.0
    %73 = vmatpush1.msra.mxu0 0.0
    %74 = vmatprep.subr.mxu0 0.0
    %75 = vmatpush1.msra.mxu0 0.0
    %76 = vmatprep.subr.mxu0 0.0
    %77 = vmatpush1.msra.mxu0 0.0
    %78 = vmatprep.subr.mxu0 0.0
    %79 = vmatpush1.msra.mxu0 0.0
    %80 = vmatprep.subr.mxu0 0.0
    %81 = vmatpush1.msra.mxu0 0.0
    %82 = vmatprep.subr.mxu0 0.0
    %83 = vmatpush1.msra.mxu0 0.0
    %84 = vmatprep.subr.mxu0 0.0
    %85 = vmatpush1.msra.mxu0 0.0
    %86 = vmatprep.subr.mxu0 0.0
    %87 = vmatpush1.msra.mxu0 0.0
    %88 = vmatprep.subr.mxu0 0.0
    %89 = vmatpush1.msra.mxu0 0.0
    %90 = vmatprep.subr.mxu0 0.0
    %91 = vmatpush1.msra.mxu0 0.0
    %92 = vmatprep.subr.mxu0 0.0
    %93 = vmatpush1.msra.mxu0 0.0
    %94 = vmatprep.subr.mxu0 0.0
    %95 = vmatpush1.msra.mxu0 0.0
    %96 = vmatprep.subr.mxu0 0.0
    %97 = vmatpush1.msra.mxu0 0.0
    %98 = vmatprep.subr.mxu0 0.0
    %99 = vmatpush1.msra.mxu0 0.0
    %100 = vmatprep.subr.mxu0 0.0
    %101 = vmatpush1.msra.mxu0 0.0
    %102 = vmatprep.subr.mxu0 0.0
    %103 = vmatpush1.msra.mxu0 0.0
    %104 = vmatprep.subr.mxu0 0.0
    %105 = vmatpush1.msra.mxu0 0.0
    %106 = vmatprep.subr.mxu0 0.0
    %107 = vmatpush1.msra.mxu0 0.0
    %108 = vmatprep.subr.mxu0 0.0
    %109 = vmatpush1.msra.mxu0 0.0
    %110 = vmatprep.subr.mxu0 0.0
    %111 = vmatpush1.msra.mxu0 0.0
    %112 = vmatprep.subr.mxu0 0.0
    %113 = vmatpush1.msra.mxu0 0.0
    %114 = vmatprep.subr.mxu0 0.0
    %115 = vmatpush1.msra.mxu0 0.0
    %116 = vmatprep.mubr.f32.mxu0 0.0
    %117 = vmatmul.mubr.f32.gmra.mrb[0].mxu0 %v50
    %v118 = vpop.f32.mrb[0].mxu0
    %v119 = vadd.f32 %v41, %v118
    %v120 = vpop.f32.mrb[0].mxu0
    %v121 = vadd.f32 %v45, %v120
    %122 = vdwg.mxu0
    %v123 = vxor.u32 %v121, 2147483648
    %v124 = vmul.f32 %v123, 1.442695
    %v125 = vpow.pop %v124
    %v126 = vadd.f32 %v125, 1.0
    %v127 = vrcp.pop %v126
    %v128 = vmul.f32 1.0, %v127
    %v129 = vmul.f32 %v119, %v128
    %v130 = vld [vmem:[#allocation2] sm:$0xff]
    %v131 = vmax.f32 %v130, %v129
    %132 = vst [vmem:[#allocation2] sm:$0xff] %v131
  $region26: #{cnn_forward.1} parent=0 // loop_footer
    %s30 = sadd.s32 1, %s26
  $region27: #{cnn_forward.1} parent=0 // loop_footer_branch
    %25 = sbr.rel target = $region23
  $region28: #{cnn_forward.1} parent=0 // loop_exit
    _
  %v133 = vld [vmem:[#allocation2] sm:$0xff]
  %v134 = vld [vmem:[%s3] sm:$0x1]
  %v135 = vld [vmem:[#allocation3] sm:$0x1]
  %137 = vset.pattern.permute.xlu0 0
  %138 = vperm.xlu0 %137, %v135
  %v139 = vpop.permute.xlu0 %138
  %v141 = vlaneseq
  %v142 = vshrl.u32 %v141, 7
  %v143 = vsub.s32 0, %v142
  %v144 = vrot.slane %v139, %v143
  %145 = vmatprep.subr.mxu0 0.0
  %146 = vmatpush1.xpose.msra.mxu0 %v133
  %147 = vmatprep.subr.mxu0 0.0
  %148 = vmatpush1.xpose.msra.mxu0 0.0
  %149 = vmatprep.subr.mxu0 0.0
  %150 = vmatpush1.xpose.msra.mxu0 0.0
  %151 = vmatprep.subr.mxu0 0.0
  %152 = vmatpush1.xpose.msra.mxu0 0.0
  %153 = vmatprep.subr.mxu0 0.0
  %154 = vmatpush1.xpose.msra.mxu0 0.0
  %155 = vmatprep.subr.mxu0 0.0
  %156 = vmatpush1.xpose.msra.mxu0 0.0
  %157 = vmatprep.subr.mxu0 0.0
  %158 = vmatpush1.xpose.msra.mxu0 0.0
  %159 = vmatprep.subr.mxu0 0.0
  %160 = vmatpush1.xpose.msra.mxu0 0.0
  %161 = vmatprep.subr.mxu0 0.0
  %162 = vmatpush1.xpose.msra.mxu0 0.0
  %163 = vmatprep.subr.mxu0 0.0
  %164 = vmatpush1.xpose.msra.mxu0 0.0
  %165 = vmatprep.subr.mxu0 0.0
  %166 = vmatpush1.xpose.msra.mxu0 0.0
  %167 = vmatprep.subr.mxu0 0.0
  %168 = vmatpush1.xpose.msra.mxu0 0.0
  %169 = vmatprep.subr.mxu0 0.0
  %170 = vmatpush1.xpose.msra.mxu0 0.0
  %171 = vmatprep.subr.mxu0 0.0
  %172 = vmatpush1.xpose.msra.mxu0 0.0
  %173 = vmatprep.subr.mxu0 0.0
  %174 = vmatpush1.xpose.msra.mxu0 0.0
  %175 = vmatprep.subr.mxu0 0.0
  %176 = vmatpush1.xpose.msra.mxu0 0.0
  %177 = vmatprep.subr.mxu0 0.0
  %178 = vmatpush1.xpose.msra.mxu0 0.0
  %179 = vmatprep.subr.mxu0 0.0
  %180 = vmatpush1.xpose.msra.mxu0 0.0
  %181 = vmatprep.subr.mxu0 0.0
  %182 = vmatpush1.xpose.msra.mxu0 0.0
  %183 = vmatprep.subr.mxu0 0.0
  %184 = vmatpush1.xpose.msra.mxu0 0.0
  %185 = vmatprep.subr.mxu0 0.0
  %186 = vmatpush1.xpose.msra.mxu0 0.0
  %187 = vmatprep.subr.mxu0 0.0
  %188 = vmatpush1.xpose.msra.mxu0 0.0
  %189 = vmatprep.subr.mxu0 0.0
  %190 = vmatpush1.xpose.msra.mxu0 0.0
  %191 = vmatprep.subr.mxu0 0.0
  %192 = vmatpush1.xpose.msra.mxu0 0.0
  %193 = vmatprep.subr.mxu0 0.0
  %194 = vmatpush1.xpose.msra.mxu0 0.0
  %195 = vmatprep.subr.mxu0 0.0
  %196 = vmatpush1.xpose.msra.mxu0 0.0
  %197 = vmatprep.subr.mxu0 0.0
  %198 = vmatpush1.xpose.msra.mxu0 0.0
  %199 = vmatprep.subr.mxu0 0.0
  %200 = vmatpush1.xpose.msra.mxu0 0.0
  %201 = vmatprep.subr.mxu0 0.0
  %202 = vmatpush1.xpose.msra.mxu0 0.0
  %203 = vmatprep.subr.mxu0 0.0
  %204 = vmatpush1.xpose.msra.mxu0 0.0
  %205 = vmatprep.subr.mxu0 0.0
  %206 = vmatpush1.xpose.msra.mxu0 0.0
  %207 = vmatprep.subr.mxu0 0.0
  %208 = vmatpush1.xpose.msra.mxu0 0.0
  %209 = vmatprep.mubr.f32.mxu0 0.0
  %210 = vmatmul.mubr.f32.gmra.mrb[0].mxu0 %v134
  %v211 = vpop.f32.mrb[0].mxu0
  %v212 = vadd.f32 %v144, %v211
  %v213 = vpop.f32.mrb[0].mxu0
  %214 = vdwg.mxu0
  %vm215 = vcmask 57344
  %216 = vst.msk [vmem:[%s5] sm:$0x1] %vm215, %v212
  // Predicated region
  $region29: #{cnn_forward.1} parent=0 // pred_check
    _
  $region30: #{cnn_forward.1} parent=0 // pred_check_branch
    %218 = sbr.rel (0) target = $region32
  $region31: #{cnn_forward.1} parent=0 // pred_region
    _
  $region32: #{cnn_forward.1} parent=0 // pred_fallthru
    _
  // Predicated region
  $region33: #{cnn_forward.1} parent=0 // pred_check
    _
  $region34: #{cnn_forward.1} parent=0 // pred_check_branch
    %220 = sbr.rel (0) target = $region36
  $region35: #{cnn_forward.1} parent=0 // pred_region
    _
  $region36: #{cnn_forward.1} parent=0 // pred_fallthru
    _

</llo_original>
